<compile_context>
chip_gen: v7x
topology: tpu7x:2x2x1
jax: 0.10.0
libtpu: 0.0.40
codegen_flags: <defaults>
</compile_context>

<pallas_src>
import jax
import jax.numpy as jnp
from jax.experimental import pallas as pl
from jax.experimental.pallas import tpu as pltpu

D_IN = 2    # FuzzyLayer size_in
D_OUT = 4   # FuzzyLayer size_out


def fuzzy_kernel(a_ref, xt_ref, out_ref):
    # a_ref  : SMEM [D_OUT*D_IN*(D_IN+1)]  flattened A (m-major, then i, then j/bias)
    # xt_ref : VMEM [D_IN, TB]             batch-along-lanes input tile
    # out_ref: VMEM [D_OUT, TB]            batch-along-lanes Gaussian memberships
    d_in = xt_ref.shape[0]
    d_out = out_ref.shape[0]

    # Lane-dense rows of x, each [1, TB].
    xrows = [xt_ref[j:j + 1, :] for j in range(d_in)]

    rows = []
    for m in range(d_out):                       # static unroll (D_OUT = 4)
        ssq = None
        for i in range(d_in):                    # static unroll (D_IN = 2)
            base = (m * d_in + i) * (d_in + 1)
            t = a_ref[base + d_in]               # bias A[m,i,D_IN]: scalar splat
            for j in range(d_in):
                t = t + a_ref[base + j] * xrows[j]   # scalar * lane-dense vector
            sq = t * t
            ssq = sq if ssq is None else ssq + sq
        rows.append(jnp.exp(-ssq))               # EUP, separate VLIW slot

    # Single full-tile, unmasked lane-dense store.
    out_ref[...] = jnp.concatenate(rows, axis=0)


def fuzzy_forward(x, A, *, tb_cap=65536):
    """x: [B, D_IN] float32, A: [D_OUT, D_IN, D_IN+1] float32 -> [B, D_OUT]."""
    B, d_in = x.shape
    d_out = A.shape[0]

    # Layout plumbing (outside the kernel): batch along lanes, params flattened
    # into a tiny SMEM-resident table.
    xt = x.T.astype(jnp.float32)                       # [D_IN, B]
    a_flat = A.reshape(-1).astype(jnp.float32)         # [D_OUT*D_IN*(D_IN+1)] = 24

    # Lane tile: must be a multiple of 128 or equal to the full batch dim.
    if B <= 256:
        TB = B                                          # single full-width block
    else:
        # aim for >=2 grid steps (v7x megacore), multiple of 128, capped so the
        # double-buffered x+out tiles stay ~8 MiB (fits every generation's
        # scoped-VMEM default without raising vmem_limit_bytes)
        TB = min(tb_cap, ((pl.cdiv(B, 2) + 127) // 128) * 128)
    grid = (pl.cdiv(B, TB),)

    out_t = pl.pallas_call(
        fuzzy_kernel,
        out_shape=jax.ShapeDtypeStruct((d_out, B), jnp.float32),
        grid=grid,
        in_specs=[
            pl.BlockSpec(memory_space=pltpu.MemorySpace.SMEM),   # A: 24 scalars
            pl.BlockSpec((d_in, TB), lambda i: (0, i)),          # x lane tile
        ],
        out_specs=pl.BlockSpec((d_out, TB), lambda i: (0, i)),
        compiler_params=pltpu.CompilerParams(
            dimension_semantics=("parallel",)),                  # shard batch across TCs
    )(a_flat, xt)

    return out_t.T                                      # [B, D_OUT] (caller could consume [D_OUT, B])


if __name__ == "__main__":
    key = jax.random.PRNGKey(0)
    kx, kc, kx2, ka2 = jax.random.split(key, 4)

    # Deterministic synthetic inputs / parameters (FuzzyLayer.fromdimentions init:
    # random centers, unit scales).
    B = 8
    x = jax.random.normal(kx, (B, D_IN), dtype=jnp.float32)
    centers = jax.random.normal(kc, (D_OUT, D_IN), dtype=jnp.float32)
    scales = jnp.ones((D_OUT, D_IN), dtype=jnp.float32)

    # A[m] = [diag(scales_m) | -diag(scales_m) @ centers_m] -> [D_OUT, D_IN, D_IN+1]
    diag = jax.vmap(jnp.diag)(scales)                              # [D_OUT, D_IN, D_IN]
    colb = -jnp.einsum("mij,mj->mi", diag, centers)[..., None]     # [D_OUT, D_IN, 1]
    A = jnp.concatenate([diag, colb], axis=-1)                     # [D_OUT, D_IN, D_IN+1]

    def reference(xv, Av):
        xh = jnp.concatenate([xv, jnp.ones((xv.shape[0], 1), xv.dtype)], axis=1)
        t = jnp.einsum("mij,bj->bmi", Av, xh)
        return jnp.exp(-jnp.sum(t * t, axis=-1))

    out = jax.block_until_ready(fuzzy_forward(x, A))
    ref = reference(x, A)
    assert out.shape == (B, D_OUT)
    assert jnp.allclose(out, ref, atol=1e-5, rtol=1e-5), (out, ref)

    # Second check: unaligned batch exercises the multi-block ragged-tail path,
    # and a non-diagonal A exercises the general learnable affine case.
    B2 = 300
    x2 = jax.random.normal(kx2, (B2, D_IN), dtype=jnp.float32)
    A2 = jax.random.normal(ka2, (D_OUT, D_IN, D_IN + 1), dtype=jnp.float32)
    out2 = jax.block_until_ready(fuzzy_forward(x2, A2))
    ref2 = reference(x2, A2)
    assert out2.shape == (B2, D_OUT)
    assert jnp.allclose(out2, ref2, atol=1e-5, rtol=1e-5)

    print("KERNEL_OK")
</pallas_src>

<mosaic_0001>
module attributes {stable_mosaic.version = 11 : i64} {
  func.func @fuzzy_kernel(%arg0: i32, %arg1: memref<24xf32, #tpu.memory_space<smem>>, %arg2: memref<2x8xf32, #tpu.memory_space<vmem>>, %arg3: memref<4x8xf32, #tpu.memory_space<vmem>>) attributes {dimension_semantics = [#tpu.dimension_semantics<parallel>], iteration_bounds = array<i64: 1>, scalar_prefetch = 0 : i64, scratch_operands = 0 : i64, tpu.core_type = #tpu.core_type<tc>, window_params = [{transform_indices = @transform_0, window_bounds = array<i64: 24>}, {transform_indices = @transform_1, window_bounds = array<i64: 2, 8>}, {transform_indices = @transform_2, window_bounds = array<i64: 4, 8>}]} {
    %c0 = arith.constant 0 : index
    %c0_0 = arith.constant 0 : index
    %0 = vector.load %arg2[%c0, %c0_0] : memref<2x8xf32, #tpu.memory_space<vmem>>, vector<1x8xf32>
    %c1 = arith.constant 1 : index
    %c0_1 = arith.constant 0 : index
    %1 = vector.load %arg2[%c1, %c0_1] : memref<2x8xf32, #tpu.memory_space<vmem>>, vector<1x8xf32>
    %c2 = arith.constant 2 : index
    %2 = memref.load %arg1[%c2] : memref<24xf32, #tpu.memory_space<smem>>
    %c0_2 = arith.constant 0 : index
    %3 = memref.load %arg1[%c0_2] : memref<24xf32, #tpu.memory_space<smem>>
    %4 = vector.broadcast %3 : f32 to vector<1x8xf32>
    %5 = arith.mulf %4, %0 : vector<1x8xf32>
    %6 = vector.broadcast %2 : f32 to vector<1x8xf32>
    %7 = arith.addf %6, %5 : vector<1x8xf32>
    %c1_3 = arith.constant 1 : index
    %8 = memref.load %arg1[%c1_3] : memref<24xf32, #tpu.memory_space<smem>>
    %9 = vector.broadcast %8 : f32 to vector<1x8xf32>
    %10 = arith.mulf %9, %1 : vector<1x8xf32>
    %11 = arith.addf %7, %10 : vector<1x8xf32>
    %12 = arith.mulf %11, %11 : vector<1x8xf32>
    %c5 = arith.constant 5 : index
    %13 = memref.load %arg1[%c5] : memref<24xf32, #tpu.memory_space<smem>>
    %c3 = arith.constant 3 : index
    %14 = memref.load %arg1[%c3] : memref<24xf32, #tpu.memory_space<smem>>
    %15 = vector.broadcast %14 : f32 to vector<1x8xf32>
    %16 = arith.mulf %15, %0 : vector<1x8xf32>
    %17 = vector.broadcast %13 : f32 to vector<1x8xf32>
    %18 = arith.addf %17, %16 : vector<1x8xf32>
    %c4 = arith.constant 4 : index
    %19 = memref.load %arg1[%c4] : memref<24xf32, #tpu.memory_space<smem>>
    %20 = vector.broadcast %19 : f32 to vector<1x8xf32>
    %21 = arith.mulf %20, %1 : vector<1x8xf32>
    %22 = arith.addf %18, %21 : vector<1x8xf32>
    %23 = arith.mulf %22, %22 : vector<1x8xf32>
    %24 = arith.addf %12, %23 : vector<1x8xf32>
    %cst = arith.constant 0.000000e+00 : f32
    %25 = vector.broadcast %cst : f32 to vector<1x8xf32>
    %26 = arith.subf %25, %24 : vector<1x8xf32>
    %27 = math.exp %26 : vector<1x8xf32>
    %c8 = arith.constant 8 : index
    %28 = memref.load %arg1[%c8] : memref<24xf32, #tpu.memory_space<smem>>
    %c6 = arith.constant 6 : index
    %29 = memref.load %arg1[%c6] : memref<24xf32, #tpu.memory_space<smem>>
    %30 = vector.broadcast %29 : f32 to vector<1x8xf32>
    %31 = arith.mulf %30, %0 : vector<1x8xf32>
    %32 = vector.broadcast %28 : f32 to vector<1x8xf32>
    %33 = arith.addf %32, %31 : vector<1x8xf32>
    %c7 = arith.constant 7 : index
    %34 = memref.load %arg1[%c7] : memref<24xf32, #tpu.memory_space<smem>>
    %35 = vector.broadcast %34 : f32 to vector<1x8xf32>
    %36 = arith.mulf %35, %1 : vector<1x8xf32>
    %37 = arith.addf %33, %36 : vector<1x8xf32>
    %38 = arith.mulf %37, %37 : vector<1x8xf32>
    %c11 = arith.constant 11 : index
    %39 = memref.load %arg1[%c11] : memref<24xf32, #tpu.memory_space<smem>>
    %c9 = arith.constant 9 : index
    %40 = memref.load %arg1[%c9] : memref<24xf32, #tpu.memory_space<smem>>
    %41 = vector.broadcast %40 : f32 to vector<1x8xf32>
    %42 = arith.mulf %41, %0 : vector<1x8xf32>
    %43 = vector.broadcast %39 : f32 to vector<1x8xf32>
    %44 = arith.addf %43, %42 : vector<1x8xf32>
    %c10 = arith.constant 10 : index
    %45 = memref.load %arg1[%c10] : memref<24xf32, #tpu.memory_space<smem>>
    %46 = vector.broadcast %45 : f32 to vector<1x8xf32>
    %47 = arith.mulf %46, %1 : vector<1x8xf32>
    %48 = arith.addf %44, %47 : vector<1x8xf32>
    %49 = arith.mulf %48, %48 : vector<1x8xf32>
    %50 = arith.addf %38, %49 : vector<1x8xf32>
    %cst_4 = arith.constant 0.000000e+00 : f32
    %51 = vector.broadcast %cst_4 : f32 to vector<1x8xf32>
    %52 = arith.subf %51, %50 : vector<1x8xf32>
    %53 = math.exp %52 : vector<1x8xf32>
    %c14 = arith.constant 14 : index
    %54 = memref.load %arg1[%c14] : memref<24xf32, #tpu.memory_space<smem>>
    %c12 = arith.constant 12 : index
    %55 = memref.load %arg1[%c12] : memref<24xf32, #tpu.memory_space<smem>>
    %56 = vector.broadcast %55 : f32 to vector<1x8xf32>
    %57 = arith.mulf %56, %0 : vector<1x8xf32>
    %58 = vector.broadcast %54 : f32 to vector<1x8xf32>
    %59 = arith.addf %58, %57 : vector<1x8xf32>
    %c13 = arith.constant 13 : index
    %60 = memref.load %arg1[%c13] : memref<24xf32, #tpu.memory_space<smem>>
    %61 = vector.broadcast %60 : f32 to vector<1x8xf32>
    %62 = arith.mulf %61, %1 : vector<1x8xf32>
    %63 = arith.addf %59, %62 : vector<1x8xf32>
    %64 = arith.mulf %63, %63 : vector<1x8xf32>
    %c17 = arith.constant 17 : index
    %65 = memref.load %arg1[%c17] : memref<24xf32, #tpu.memory_space<smem>>
    %c15 = arith.constant 15 : index
    %66 = memref.load %arg1[%c15] : memref<24xf32, #tpu.memory_space<smem>>
    %67 = vector.broadcast %66 : f32 to vector<1x8xf32>
    %68 = arith.mulf %67, %0 : vector<1x8xf32>
    %69 = vector.broadcast %65 : f32 to vector<1x8xf32>
    %70 = arith.addf %69, %68 : vector<1x8xf32>
    %c16 = arith.constant 16 : index
    %71 = memref.load %arg1[%c16] : memref<24xf32, #tpu.memory_space<smem>>
    %72 = vector.broadcast %71 : f32 to vector<1x8xf32>
    %73 = arith.mulf %72, %1 : vector<1x8xf32>
    %74 = arith.addf %70, %73 : vector<1x8xf32>
    %75 = arith.mulf %74, %74 : vector<1x8xf32>
    %76 = arith.addf %64, %75 : vector<1x8xf32>
    %cst_5 = arith.constant 0.000000e+00 : f32
    %77 = vector.broadcast %cst_5 : f32 to vector<1x8xf32>
    %78 = arith.subf %77, %76 : vector<1x8xf32>
    %79 = math.exp %78 : vector<1x8xf32>
    %c20 = arith.constant 20 : index
    %80 = memref.load %arg1[%c20] : memref<24xf32, #tpu.memory_space<smem>>
    %c18 = arith.constant 18 : index
    %81 = memref.load %arg1[%c18] : memref<24xf32, #tpu.memory_space<smem>>
    %82 = vector.broadcast %81 : f32 to vector<1x8xf32>
    %83 = arith.mulf %82, %0 : vector<1x8xf32>
    %84 = vector.broadcast %80 : f32 to vector<1x8xf32>
    %85 = arith.addf %84, %83 : vector<1x8xf32>
    %c19 = arith.constant 19 : index
    %86 = memref.load %arg1[%c19] : memref<24xf32, #tpu.memory_space<smem>>
    %87 = vector.broadcast %86 : f32 to vector<1x8xf32>
    %88 = arith.mulf %87, %1 : vector<1x8xf32>
    %89 = arith.addf %85, %88 : vector<1x8xf32>
    %90 = arith.mulf %89, %89 : vector<1x8xf32>
    %c23 = arith.constant 23 : index
    %91 = memref.load %arg1[%c23] : memref<24xf32, #tpu.memory_space<smem>>
    %c21 = arith.constant 21 : index
    %92 = memref.load %arg1[%c21] : memref<24xf32, #tpu.memory_space<smem>>
    %93 = vector.broadcast %92 : f32 to vector<1x8xf32>
    %94 = arith.mulf %93, %0 : vector<1x8xf32>
    %95 = vector.broadcast %91 : f32 to vector<1x8xf32>
    %96 = arith.addf %95, %94 : vector<1x8xf32>
    %c22 = arith.constant 22 : index
    %97 = memref.load %arg1[%c22] : memref<24xf32, #tpu.memory_space<smem>>
    %98 = vector.broadcast %97 : f32 to vector<1x8xf32>
    %99 = arith.mulf %98, %1 : vector<1x8xf32>
    %100 = arith.addf %96, %99 : vector<1x8xf32>
    %101 = arith.mulf %100, %100 : vector<1x8xf32>
    %102 = arith.addf %90, %101 : vector<1x8xf32>
    %cst_6 = arith.constant 0.000000e+00 : f32
    %103 = vector.broadcast %cst_6 : f32 to vector<1x8xf32>
    %104 = arith.subf %103, %102 : vector<1x8xf32>
    %105 = math.exp %104 : vector<1x8xf32>
    %106 = tpu.concatenate %27, %53, %79, %105 in 0 : vector<1x8xf32>, vector<1x8xf32>, vector<1x8xf32>, vector<1x8xf32> -> vector<4x8xf32>
    %c0_7 = arith.constant 0 : index
    %c0_8 = arith.constant 0 : index
    %107 = vector.load %arg3[%c0_7, %c0_8] : memref<4x8xf32, #tpu.memory_space<vmem>>, vector<4x8xf32>
    tpu.vector_store %arg3[%c0_7, %c0_8], %106 {strides = array<i32>} : memref<4x8xf32, #tpu.memory_space<vmem>>, vector<4x8xf32>,
    return
  }
  func.func @transform_0(%arg0: i32) -> i32 {
    %c0_i32 = arith.constant 0 : i32
    %c0_i32_0 = arith.constant 0 : i32
    return %c0_i32 : i32
  }
  func.func @transform_1(%arg0: i32) -> (i32, i32) {
    %c0_i32 = arith.constant 0 : i32
    %c0_i32_0 = arith.constant 0 : i32
    return %c0_i32, %arg0 : i32, i32
  }
  func.func @transform_2(%arg0: i32) -> (i32, i32) {
    %c0_i32 = arith.constant 0 : i32
    %c0_i32_0 = arith.constant 0 : i32
    return %c0_i32, %arg0 : i32, i32
  }
}

</mosaic_0001>

<llo_original>
// kernel: tpu_custom_call.1
$region0: #{tpu_custom_call.1}
  #allocation0 [shape = 'u32[]', space=smem, size = 0x4, offset = 0x4, fixed_abs, tag = 'smem constant byte address 0x4 - core index']
  #allocation1 [shape = 'u32[144,128]{1,0:T(1,128)}', space=vmem, size = 0x12000, scoped, tag = 'internal scratch']
  %s0 = inlined_call_operand.hbm [shape: f32[24], index: 0, kind: input, shape index: {}]
  %s1 = inlined_call_operand.vmem [shape: f32[2,8], index: 1, kind: input, shape index: {}]
  %s2 = inlined_call_operand.hbm [shape: f32[4,8], index: 2, kind: output, shape index: {}]
  %s3 = sld [smem:[#allocation0]]
  $region22: #{tpu_custom_call.1} parent=0
    _
  %s5 = ssub.s32 1, %s3
  %s6 = scalar_select 0, %s5, %s3
  $region1: #{tpu_custom_call.1} parent=0
    #allocation2 [shape = 'u8[512]{0}', space=smem, size = 0x200, scoped, tag = 'input window, operand 0, single buffered']
    #allocation3 [shape = 's32[1]{0}', space=sflag, size = 0x4, scoped, tag = 'scoped memory for tpu_custom_call.1']
    #allocation4 [shape = 's32[1]{0}', space=sflag, size = 0x4, scoped, tag = 'scoped memory for tpu_custom_call.1']
    #allocation5 [shape = 'u8[2048]{0}', space=vmem, size = 0x800, scoped, tag = 'output window, operand 0, single buffered']
    %7 = vsyncpa [#allocation4], 0
    %8 = vsyncpa [#allocation3], 0
    // Predicated region
    $region2: #{tpu_custom_call.1} parent=1 // pred_check
      _
    $region3: #{tpu_custom_call.1} parent=1 // pred_check_branch
      %10 = sbr.rel (0) target = $region5
    $region4: #{tpu_custom_call.1} parent=1 // pred_region
      %s12 = ssub.s32 16, 16
      %13 = vsyncadd [#allocation4], %s12
      %16 = dma.hbm_to_smem %s0, 16, [#allocation2], [#allocation4]
    $region5: #{tpu_custom_call.1} parent=1 // pred_fallthru
      _
    // Predicated region
    $region6: #{tpu_custom_call.1} parent=1 // pred_check
      _
    $region7: #{tpu_custom_call.1} parent=1 // pred_check_branch
      %18 = sbr.rel (0) target = $region9
    $region8: #{tpu_custom_call.1} parent=1 // pred_region
      _
    $region9: #{tpu_custom_call.1} parent=1 // pred_fallthru
      _
    // Predicated region
    $region10: #{tpu_custom_call.1} parent=1 // pred_check
      _
    $region11: #{tpu_custom_call.1} parent=1 // pred_check_branch
      %20 = sbr.rel (0) target = $region13
    $region12: #{tpu_custom_call.1} parent=1 // pred_region
      %21 = dma.done [#allocation4], 16
    $region13: #{tpu_custom_call.1} parent=1 // pred_fallthru
      _
    %22 = sfence
    %v23 = vld [vmem:[%s1] sm:$0x1]
    %v24 = vld [vmem:[%s1 + $0x1] sm:$0x1]
    %s25 = sld [smem:[#allocation2 + $0x2]]
    %s26 = sld [smem:[#allocation2]]
    %v27 = vstv %s26
    %v28 = vmul.f32 %v27, %v23
    %v29 = vstv %s25
    %v30 = vadd.f32 %v29, %v28
    %s31 = sld [smem:[#allocation2 + $0x1]]
    %v32 = vstv %s31
    %v33 = vmul.f32 %v32, %v24
    %v34 = vadd.f32 %v30, %v33
    %v35 = vmul.f32 %v34, %v34
    %s36 = sld [smem:[#allocation2 + $0x5]]
    %s37 = sld [smem:[#allocation2 + $0x3]]
    %v38 = vstv %s37
    %v39 = vmul.f32 %v38, %v23
    %v40 = vstv %s36
    %v41 = vadd.f32 %v40, %v39
    %s42 = sld [smem:[#allocation2 + $0x4]]
    %v43 = vstv %s42
    %v44 = vmul.f32 %v43, %v24
    %v45 = vadd.f32 %v41, %v44
    %v46 = vmul.f32 %v45, %v45
    %v47 = vadd.f32 %v35, %v46
    %v48 = vsub.f32 0.0, %v47
    %v49 = vmul.f32 %v48, 1.442695
    %v50 = vpow.pop %v49
    %s51 = sld [smem:[#allocation2 + $0x8]]
    %s52 = sld [smem:[#allocation2 + $0x6]]
    %v53 = vstv %s52
    %v54 = vmul.f32 %v53, %v23
    %v55 = vstv %s51
    %v56 = vadd.f32 %v55, %v54
    %s57 = sld [smem:[#allocation2 + $0x7]]
    %v58 = vstv %s57
    %v59 = vmul.f32 %v58, %v24
    %v60 = vadd.f32 %v56, %v59
    %v61 = vmul.f32 %v60, %v60
    %s62 = sld [smem:[#allocation2 + $0xb]]
    %s63 = sld [smem:[#allocation2 + $0x9]]
    %v64 = vstv %s63
    %v65 = vmul.f32 %v64, %v23
    %v66 = vstv %s62
    %v67 = vadd.f32 %v66, %v65
    %s68 = sld [smem:[#allocation2 + $0xa]]
    %v69 = vstv %s68
    %v70 = vmul.f32 %v69, %v24
    %v71 = vadd.f32 %v67, %v70
    %v72 = vmul.f32 %v71, %v71
    %v73 = vadd.f32 %v61, %v72
    %v74 = vsub.f32 0.0, %v73
    %v75 = vmul.f32 %v74, 1.442695
    %v76 = vpow.pop %v75
    %s77 = sld [smem:[#allocation2 + $0xe]]
    %s78 = sld [smem:[#allocation2 + $0xc]]
    %v79 = vstv %s78
    %v80 = vmul.f32 %v79, %v23
    %v81 = vstv %s77
    %v82 = vadd.f32 %v81, %v80
    %s83 = sld [smem:[#allocation2 + $0xd]]
    %v84 = vstv %s83
    %v85 = vmul.f32 %v84, %v24
    %v86 = vadd.f32 %v82, %v85
    %v87 = vmul.f32 %v86, %v86
    %s88 = sld [smem:[#allocation2 + $0x11]]
    %s89 = sld [smem:[#allocation2 + $0xf]]
    %v90 = vstv %s89
    %v91 = vmul.f32 %v90, %v23
    %v92 = vstv %s88
    %v93 = vadd.f32 %v92, %v91
    %s94 = sld [smem:[#allocation2 + $0x10]]
    %v95 = vstv %s94
    %v96 = vmul.f32 %v95, %v24
    %v97 = vadd.f32 %v93, %v96
    %v98 = vmul.f32 %v97, %v97
    %v99 = vadd.f32 %v87, %v98
    %v100 = vsub.f32 0.0, %v99
    %v101 = vmul.f32 %v100, 1.442695
    %v102 = vpow.pop %v101
    %s103 = sld [smem:[#allocation2 + $0x14]]
    %s104 = sld [smem:[#allocation2 + $0x12]]
    %v105 = vstv %s104
    %v106 = vmul.f32 %v105, %v23
    %v107 = vstv %s103
    %v108 = vadd.f32 %v107, %v106
    %s109 = sld [smem:[#allocation2 + $0x13]]
    %v110 = vstv %s109
    %v111 = vmul.f32 %v110, %v24
    %v112 = vadd.f32 %v108, %v111
    %v113 = vmul.f32 %v112, %v112
    %s114 = sld [smem:[#allocation2 + $0x17]]
    %s115 = sld [smem:[#allocation2 + $0x15]]
    %v116 = vstv %s115
    %v117 = vmul.f32 %v116, %v23
    %v118 = vstv %s114
    %v119 = vadd.f32 %v118, %v117
    %s120 = sld [smem:[#allocation2 + $0x16]]
    %v121 = vstv %s120
    %v122 = vmul.f32 %v121, %v24
    %v123 = vadd.f32 %v119, %v122
    %v124 = vmul.f32 %v123, %v123
    %v125 = vadd.f32 %v113, %v124
    %v126 = vsub.f32 0.0, %v125
    %v127 = vmul.f32 %v126, 1.442695
    %v128 = vpow.pop %v127
    %v130 = vrot.slane %v76, 7
    %v133 = vrot.slane %v102, 6
    %v136 = vrot.slane %v128, 5
    %vm138 = vcmask 1040384
    %v139 = vsel %vm138, %v50, %v130
    %vm140 = vcmask 1041408
    %v141 = vsel %vm140, %v139, %v133
    %vm142 = vcmask 1042432
    %v143 = vsel %vm142, %v141, %v136
    %vm144 = vcmask 60416
    %145 = vst.msk [vmem:[#allocation5] sm:$0xf] %vm144, %v143
    // Predicated region
    $region14: #{tpu_custom_call.1} parent=1 // pred_check
      _
    $region15: #{tpu_custom_call.1} parent=1 // pred_check_branch
      %147 = sbr.rel (0) target = $region17
    $region16: #{tpu_custom_call.1} parent=1 // pred_region
      %s149 = ssub.s32 64, 64
      %150 = vsyncadd [#allocation3], %s149
      %s152 = sshll.u32 [#allocation5], 4
      %s153 = int_to_ptr.vmem [resolvable:$true] %s152
      %155 = dma.vmem_to_hbm [thread:$0]  %s153, 64, %s2, [#allocation3]
    $region17: #{tpu_custom_call.1} parent=1 // pred_fallthru
      _
    // Predicated region
    $region18: #{tpu_custom_call.1} parent=1 // pred_check
      _
    $region19: #{tpu_custom_call.1} parent=1 // pred_check_branch
      %157 = sbr.rel (0) target = $region21
    $region20: #{tpu_custom_call.1} parent=1 // pred_region
      %158 = dma.done [#allocation3], 64
    $region21: #{tpu_custom_call.1} parent=1 // pred_fallthru
      _
    %159 = vsyncpa [#allocation3], 1
    %160 = vsyncpa [#allocation4], 1

</llo_original>
